<compile_context>
chip_gen: v7x
topology: tpu7x:2x2x1
jax: 0.10.0
libtpu: 0.0.40
codegen_flags: <defaults>
</compile_context>

<pallas_src>
import math
import functools

import jax
import jax.numpy as jnp
from jax import lax
from jax.experimental import pallas as pl
from jax.experimental.pallas import tpu as pltpu


# -----------------------------------------------------------------------------
# Kernels
# -----------------------------------------------------------------------------
def _conv1d_small_kernel(x_ref, w_ref, b_ref, o_ref):
    """Single-shot path for short sequences (L_out < 128).

    x_ref: (K*C_in, N*L_out) im2col slab, batch folded onto the lane axis
    w_ref: (C_out, K*C_in);  b_ref: (C_out, 1);  o_ref: (C_out, N*L_out)
    """
    acc = jnp.dot(w_ref[...], x_ref[...], preferred_element_type=jnp.float32)
    acc = acc + b_ref[...].astype(jnp.float32)
    o_ref[...] = acc.astype(o_ref.dtype)


def _conv1d_tiled_kernel(x_hbm, w_ref, b_ref, o_ref, xwin_ref, sem,
                         *, K, dilation, C_in, TL, W_in):
    """Grid = (batch n, length-tile t); t is 'arbitrary' (sequential per core).

    x_hbm   : (N, C_in, L_padded)  full array in HBM (memory_space=pl.ANY)
    w_ref   : (C_out, K*C_in)      taps folded into the contraction dim
    b_ref   : (C_out, 1)
    o_ref   : (C_out, TL)          lane-dense output tile (batch dim squeezed)
    xwin_ref: (2, C_in, W_in)      double-buffered input windows (VMEM)
    sem     : DMA semaphores, shape (2,)
    """
    n = pl.program_id(0)
    t = pl.program_id(1)
    num_t = pl.num_programs(1)
    slot = lax.rem(t, 2)

    def window_copy(tile_idx, s):
        start = tile_idx * TL               # TL is a multiple of 128
        return pltpu.make_async_copy(
            x_hbm.at[n, :, pl.ds(start, W_in)], xwin_ref.at[s], sem.at[s])

    # Prime the pipeline at the first tile of every batch row.
    @pl.when(t == 0)
    def _():
        window_copy(0, 0).start()

    # Wait for this tile's window (started at t-1, or just above when t == 0).
    window_copy(t, slot).wait()

    # Prefetch the next tile's window into the other slot; it runs in the
    # background while the MXU works on the current tile.
    @pl.when(t + 1 < num_t)
    def _():
        window_copy(t + 1, 1 - slot).start()

    # K small accumulating MXU matmuls (contraction = C_in each).  Avoids the
    # (K*C_in, TL) im2col temporary; the MXU has large slack at these
    # contraction sizes so the extra dots are free.
    acc = jnp.dot(w_ref[:, 0:C_in], xwin_ref[slot, :, pl.ds(0, TL)],
                  preferred_element_type=jnp.float32)
    for k in range(1, K):
        acc = acc + jnp.dot(w_ref[:, k * C_in:(k + 1) * C_in],
                            xwin_ref[slot, :, pl.ds(k * dilation, TL)],
                            preferred_element_type=jnp.float32)
    acc = acc + b_ref[...].astype(jnp.float32)
    o_ref[...] = acc.astype(o_ref.dtype)


# -----------------------------------------------------------------------------
# Wrapper
# -----------------------------------------------------------------------------
def _round_up(x, m):
    return ((x + m - 1) // m) * m


def conv_forward(signal, weight, bias, *, kernel_size, stride=1, dilation=1,
                 is_causal=False, l_tile=None):
    """Forward pass of hannah Conv.  signal: (N, C_in, L) -> (N, C_out, L_out)."""
    N, C_in, L = signal.shape
    C_out = weight.shape[0]
    K = kernel_size

    pad_left = (K - 1) * dilation if is_causal else 0
    L_pad = L + pad_left
    L_out = (L_pad - dilation * (K - 1) - 1) // stride + 1

    dtype = signal.dtype
    isz = jnp.dtype(dtype).itemsize

    # Weight as (C_out, K*C_in): column k*C_in + c  <->  (tap k, channel c).
    w2d = jnp.transpose(weight, (0, 2, 1)).reshape(C_out, K * C_in).astype(dtype)
    b2 = (bias if bias is not None
          else jnp.zeros((C_out,), dtype)).reshape(C_out, 1).astype(dtype)

    if stride == 1:
        x_eff = signal
        K_eff, d_eff, Cin_eff = K, dilation, C_in
        lead_pad = pad_left
    else:
        # Rare path: reduce a strided conv to the stride-1 kernel by folding
        # the K strided taps into channels (keeps the kernel free of
        # lane-strided reads).
        x_p = jnp.pad(signal, ((0, 0), (0, 0), (pad_left, 0)))
        taps = [lax.slice(x_p, (0, 0, k * dilation),
                          (N, C_in, k * dilation + (L_out - 1) * stride + 1),
                          (1, 1, stride)) for k in range(K)]
        x_eff = jnp.concatenate(taps, axis=1)            # (N, K*C_in, L_out)
        K_eff, d_eff, Cin_eff = 1, 1, K * C_in
        lead_pad = 0

    halo = (K_eff - 1) * d_eff

    flops = 2 * N * C_out * K * C_in * L_out
    bytes_accessed = (N * C_in * L + N * C_out * L_out
                      + C_out * K * C_in + C_out) * isz
    cost = pl.CostEstimate(flops=flops, transcendentals=0,
                           bytes_accessed=bytes_accessed)

    # ---------------- small-L (streaming) path --------------------------------
    # An output last dim < 128 would lower to masked partial stores and pay one
    # grid step per batch element; instead fold batch onto lanes and run one
    # fused matmul over the whole problem.
    if L_out < 128 and N * L_out <= 32768:
        x_sm = x_eff
        if lead_pad:
            x_sm = jnp.pad(x_sm, ((0, 0), (0, 0), (lead_pad, 0)))
        taps = []
        for k in range(K_eff):
            xk = lax.slice(x_sm, (0, 0, k * d_eff),
                           (N, Cin_eff, k * d_eff + L_out))     # (N, Cin, Lo)
            taps.append(jnp.transpose(xk, (1, 0, 2)).reshape(Cin_eff, N * L_out))
        slab = jnp.concatenate(taps, axis=0)                    # (K*Cin, N*Lo)

        out2d = pl.pallas_call(
            _conv1d_small_kernel,
            out_shape=jax.ShapeDtypeStruct((C_out, N * L_out), dtype),
            cost_estimate=cost,
        )(slab, w2d, b2)
        return jnp.transpose(out2d.reshape(C_out, N, L_out), (1, 0, 2))

    # ---------------- tiled long-L path ----------------------------------------
    # Size the length tile from a per-generation VMEM budget (v7x has 64 MiB of
    # VMEM vs 128 MiB on v5e/v6e).
    try:
        vmem_cap = int(pltpu.get_tpu_info().vmem_capacity_bytes)
    except Exception:
        vmem_cap = 64 * 1024 * 1024
    budget = int(vmem_cap * 0.4)
    per_lane = (2 * Cin_eff + 2 * C_out) * isz + 4 * C_out   # windows + out + f32 acc
    const = 2 * Cin_eff * (halo + 128) * isz + (2 << 20)
    tl_budget = max(128, ((budget - const) // per_lane) // 128 * 128)
    TL = min(tl_budget, 32768, _round_up(L_out, 128))
    if l_tile is not None:
        TL = min(TL, max(128, (l_tile // 128) * 128))
    T = pl.cdiv(L_out, TL)
    W_in = _round_up(TL + halo, 128)

    # Pad so every tile's DMA window [t*TL, t*TL + W_in) is in bounds
    # (includes the causal left pad on the stride-1 path).
    needed = (T - 1) * TL + W_in
    tail_pad = needed - (x_eff.shape[-1] + lead_pad)
    if lead_pad or tail_pad:
        x_eff = jnp.pad(x_eff, ((0, 0), (0, 0), (lead_pad, tail_pad)))

    ws = (2 * Cin_eff * W_in + 2 * C_out * TL) * isz + 4 * C_out * TL \
        + 4 * (C_out * K_eff * Cin_eff + C_out) * isz
    vmem_limit = int(min(vmem_cap, max(32 * 1024 * 1024, ws + (16 << 20))))

    kernel = functools.partial(_conv1d_tiled_kernel, K=K_eff, dilation=d_eff,
                               C_in=Cin_eff, TL=TL, W_in=W_in)

    out = pl.pallas_call(
        kernel,
        out_shape=jax.ShapeDtypeStruct((N, C_out, L_out), dtype),
        grid=(N, T),
        in_specs=[
            pl.BlockSpec(memory_space=pl.ANY),                    # x stays in HBM
            pl.BlockSpec((C_out, K_eff * Cin_eff), lambda n, t: (0, 0)),
            pl.BlockSpec((C_out, 1), lambda n, t: (0, 0)),
        ],
        out_specs=pl.BlockSpec((None, C_out, TL), lambda n, t: (n, 0, t)),
        scratch_shapes=[
            pltpu.VMEM((2, Cin_eff, W_in), dtype),
            pltpu.SemaphoreType.DMA((2,)),
        ],
        compiler_params=pltpu.CompilerParams(
            dimension_semantics=("parallel", "arbitrary"),
            vmem_limit_bytes=vmem_limit),
        cost_estimate=cost,
    )(x_eff, w2d, b2)
    return out


# -----------------------------------------------------------------------------
# Parameter init (matches the PyTorch module) and plain-JAX reference
# -----------------------------------------------------------------------------
def init_conv_params(key, in_channels, out_channels, kernel_size, bias=True,
                     w_init_gain='linear'):
    gain = 1.0  # torch.nn.init.calculate_gain('linear') == 1.0
    fan_in = in_channels * kernel_size
    fan_out = out_channels * kernel_size
    limit = gain * math.sqrt(6.0 / (fan_in + fan_out))   # xavier_uniform
    kw, kb = jax.random.split(key)
    w = jax.random.uniform(kw, (out_channels, in_channels, kernel_size),
                           jnp.float32, minval=-limit, maxval=limit)
    if bias:
        bound = 1.0 / math.sqrt(fan_in)                   # default Conv1d bias init
        b = jax.random.uniform(kb, (out_channels,), jnp.float32,
                               minval=-bound, maxval=bound)
    else:
        b = None
    return w, b


def _reference(signal, weight, bias, *, kernel_size, stride, dilation, is_causal):
    if is_causal:
        pad = (kernel_size - 1) * dilation
        signal = jnp.pad(signal, ((0, 0), (0, 0), (pad, 0)))
    out = lax.conv_general_dilated(
        signal, weight, window_strides=(stride,), padding='VALID',
        rhs_dilation=(dilation,), dimension_numbers=('NCH', 'OIH', 'NCH'))
    if bias is not None:
        out = out + bias[None, :, None]
    return out


if __name__ == "__main__":
    key = jax.random.PRNGKey(0)
    ks = jax.random.split(key, 6)

    def check(out, ref):
        assert out.shape == ref.shape, (out.shape, ref.shape)
        err = float(jnp.max(jnp.abs(out - ref)))
        assert err < 2e-3, f"max abs err {err}"

    # Case 1: wavenet-style causal dilated conv, stride 1, short L (small path).
    N, C_in, L = 2, 8, 16
    C_out, K, dil = 16, 3, 2
    x = jax.random.normal(ks[0], (N, C_in, L), jnp.float32)
    w, b = init_conv_params(ks[1], C_in, C_out, K, bias=True)
    out = jax.block_until_ready(
        conv_forward(x, w, b, kernel_size=K, stride=1, dilation=dil,
                     is_causal=True))
    check(out, _reference(x, w, b, kernel_size=K, stride=1, dilation=dil,
                          is_causal=True))

    # Case 2: strided, non-causal conv (exercises the stride>1 reduction path).
    x2 = jax.random.normal(ks[2], (2, 8, 16), jnp.float32)
    w2, b2 = init_conv_params(ks[3], 8, 16, 2, bias=True)
    out2 = jax.block_until_ready(
        conv_forward(x2, w2, b2, kernel_size=2, stride=2, dilation=1,
                     is_causal=False))
    check(out2, _reference(x2, w2, b2, kernel_size=2, stride=2, dilation=1,
                           is_causal=False))

    # Case 3: longer causal sequence -> tiled, double-buffered DMA path (T > 1).
    x3 = jax.random.normal(ks[4], (2, 8, 600), jnp.float32)
    w3, b3 = init_conv_params(ks[5], 8, 16, 3, bias=True)
    out3 = jax.block_until_ready(
        conv_forward(x3, w3, b3, kernel_size=3, stride=1, dilation=4,
                     is_causal=True, l_tile=256))
    check(out3, _reference(x3, w3, b3, kernel_size=3, stride=1, dilation=4,
                           is_causal=True))

    print("KERNEL_OK")
</pallas_src>

<mosaic_0001>
module attributes {stable_mosaic.version = 11 : i64} {
  func.func @_conv1d_small_kernel(%arg0: memref<24x32xf32, #tpu.memory_space<vmem>>, %arg1: memref<16x24xf32, #tpu.memory_space<vmem>>, %arg2: memref<16x1xf32, #tpu.memory_space<vmem>>, %arg3: memref<16x32xf32, #tpu.memory_space<vmem>>) attributes {dimension_semantics = [], scalar_prefetch = 0 : i64, scratch_operands = 0 : i64, tpu.core_type = #tpu.core_type<tc>} {
    %c0 = arith.constant 0 : index
    %c0_0 = arith.constant 0 : index
    %0 = vector.load %arg1[%c0, %c0_0] : memref<16x24xf32, #tpu.memory_space<vmem>>, vector<16x24xf32>
    %c0_1 = arith.constant 0 : index
    %c0_2 = arith.constant 0 : index
    %1 = vector.load %arg0[%c0_1, %c0_2] : memref<24x32xf32, #tpu.memory_space<vmem>>, vector<24x32xf32>
    %cst = arith.constant dense<0.000000e+00> : vector<16x32xf32>
    %2 = tpu.matmul %0, %1, %cst {dimension_numbers = #tpu.dot_dimension_numbers<[1], [0], [0], [1], [0, 0, 1, 1], [], []>} : vector<16x24xf32>, vector<24x32xf32>, vector<16x32xf32> -> vector<16x32xf32>
    %c0_3 = arith.constant 0 : index
    %c0_4 = arith.constant 0 : index
    %3 = vector.load %arg2[%c0_3, %c0_4] : memref<16x1xf32, #tpu.memory_space<vmem>>, vector<16x1xf32>
    %4 = vector.broadcast %3 : vector<16x1xf32> to vector<16x32xf32>
    %5 = arith.addf %2, %4 : vector<16x32xf32>
    %c0_5 = arith.constant 0 : index
    %c0_6 = arith.constant 0 : index
    %6 = vector.load %arg3[%c0_5, %c0_6] : memref<16x32xf32, #tpu.memory_space<vmem>>, vector<16x32xf32>
    tpu.vector_store %arg3[%c0_5, %c0_6], %5 {strides = array<i32>} : memref<16x32xf32, #tpu.memory_space<vmem>>, vector<16x32xf32>,
    return
  }
}

</mosaic_0001>

<llo_original>
// kernel: tpu_custom_call.1
$region0: #{tpu_custom_call.1}
  #allocation0 [shape = 'u32[]', space=smem, size = 0x4, offset = 0x4, fixed_abs, tag = 'smem constant byte address 0x4 - core index']
  #allocation1 [shape = 'u32[144,128]{1,0:T(1,128)}', space=vmem, size = 0x12000, scoped, tag = 'internal scratch']
  %s0 = inlined_call_operand.hbm [shape: f32[24,32], index: 0, kind: input, shape index: {}]
  %s1 = inlined_call_operand.vmem [shape: f32[16,24], index: 1, kind: input, shape index: {}]
  %s2 = inlined_call_operand.vmem [shape: f32[16,1], index: 2, kind: input, shape index: {}]
  %s3 = inlined_call_operand.hbm [shape: f32[16,32], index: 3, kind: output, shape index: {}]
  %s4 = sld [smem:[#allocation0]]
  $region26: #{tpu_custom_call.1} parent=0
    _
  %s6 = ssub.s32 1, %s4
  %s7 = scalar_select 0, %s6, %s4
  $region1: #{tpu_custom_call.1} parent=0
    #allocation2 [shape = 'u8[12288]{0}', space=vmem, size = 0x3000, scoped, tag = 'input window, operand 0, single buffered']
    #allocation3 [shape = 's32[1]{0}', space=sflag, size = 0x4, scoped, tag = 'scoped memory for tpu_custom_call.1']
    #allocation4 [shape = 's32[1]{0}', space=sflag, size = 0x4, scoped, tag = 'scoped memory for tpu_custom_call.1']
    #allocation5 [shape = 'u8[8192]{0}', space=vmem, size = 0x2000, scoped, tag = 'output window, operand 0, single buffered']
    %8 = vsyncpa [#allocation3], 0
    %9 = vsyncpa [#allocation4], 0
    // Predicated region
    $region2: #{tpu_custom_call.1} parent=1 // pred_check
      _
    $region3: #{tpu_custom_call.1} parent=1 // pred_check_branch
      %11 = sbr.rel (0) target = $region5
    $region4: #{tpu_custom_call.1} parent=1 // pred_region
      %s13 = ssub.s32 384, 384
      %14 = vsyncadd [#allocation3], %s13
      %s15 = sshll.u32 [#allocation2], 4
      %s16 = int_to_ptr.vmem [resolvable:$true] %s15
      %21 = dma.hbm_to_vmem [thread:$0]  %s0, 384, %s16, [#allocation3], 128, 128, 8
    $region5: #{tpu_custom_call.1} parent=1 // pred_fallthru
      _
    // Predicated region
    $region6: #{tpu_custom_call.1} parent=1 // pred_check
      _
    $region7: #{tpu_custom_call.1} parent=1 // pred_check_branch
      %23 = sbr.rel (0) target = $region9
    $region8: #{tpu_custom_call.1} parent=1 // pred_region
      _
    $region9: #{tpu_custom_call.1} parent=1 // pred_fallthru
      _
    // Predicated region
    $region10: #{tpu_custom_call.1} parent=1 // pred_check
      _
    $region11: #{tpu_custom_call.1} parent=1 // pred_check_branch
      %25 = sbr.rel (0) target = $region13
    $region12: #{tpu_custom_call.1} parent=1 // pred_region
      _
    $region13: #{tpu_custom_call.1} parent=1 // pred_fallthru
      _
    // Predicated region
    $region14: #{tpu_custom_call.1} parent=1 // pred_check
      _
    $region15: #{tpu_custom_call.1} parent=1 // pred_check_branch
      %27 = sbr.rel (0) target = $region17
    $region16: #{tpu_custom_call.1} parent=1 // pred_region
      %28 = dma.done [#allocation3], 384
    $region17: #{tpu_custom_call.1} parent=1 // pred_fallthru
      _
    %v29 = vld [vmem:[%s1] sm:$0xff]
    %v30 = vld [vmem:[%s1 + $0x8] sm:$0xff]
    %v31 = vld [vmem:[#allocation2] sm:$0xff]
    %v32 = vld [vmem:[#allocation2 + $0x8] sm:$0xff]
    %v33 = vld [vmem:[#allocation2 + $0x10] sm:$0xff]
    %v34 = vld [vmem:[%s2] sm:$0xff]
    %v35 = vld [vmem:[%s2 + $0x8] sm:$0xff]
    %37 = vset.pattern.permute.xlu0 0
    %38 = vperm.xlu0 %37, %v34
    %v39 = vpop.permute.xlu0 %38
    %42 = vset.pattern.permute.xlu0 0
    %43 = vperm.xlu0 %42, %v35
    %v44 = vpop.permute.xlu0 %43
    %vm46 = vcmask 195584
    %v48 = vsel %vm46, %v29, 0
    %v51 = vsel %vm46, %v30, 0
    %53 = vmatprep.subr.mxu0 0.0
    %54 = vmatpush1.msra.mxu0 %v31
    %55 = vmatprep.subr.mxu0 0.0
    %56 = vmatpush1.msra.mxu0 %v32
    %57 = vmatprep.subr.mxu0 0.0
    %58 = vmatpush1.msra.mxu0 %v33
    %59 = vmatprep.subr.mxu0 0.0
    %60 = vmatpush1.msra.mxu0 0.0
    %61 = vmatprep.subr.mxu0 0.0
    %62 = vmatpush1.msra.mxu0 0.0
    %63 = vmatprep.subr.mxu0 0.0
    %64 = vmatpush1.msra.mxu0 0.0
    %65 = vmatprep.subr.mxu0 0.0
    %66 = vmatpush1.msra.mxu0 0.0
    %67 = vmatprep.subr.mxu0 0.0
    %68 = vmatpush1.msra.mxu0 0.0
    %69 = vmatprep.subr.mxu0 0.0
    %70 = vmatpush1.msra.mxu0 0.0
    %71 = vmatprep.subr.mxu0 0.0
    %72 = vmatpush1.msra.mxu0 0.0
    %73 = vmatprep.subr.mxu0 0.0
    %74 = vmatpush1.msra.mxu0 0.0
    %75 = vmatprep.subr.mxu0 0.0
    %76 = vmatpush1.msra.mxu0 0.0
    %77 = vmatprep.subr.mxu0 0.0
    %78 = vmatpush1.msra.mxu0 0.0
    %79 = vmatprep.subr.mxu0 0.0
    %80 = vmatpush1.msra.mxu0 0.0
    %81 = vmatprep.subr.mxu0 0.0
    %82 = vmatpush1.msra.mxu0 0.0
    %83 = vmatprep.subr.mxu0 0.0
    %84 = vmatpush1.msra.mxu0 0.0
    %85 = vmatprep.subr.mxu0 0.0
    %86 = vmatpush1.msra.mxu0 0.0
    %87 = vmatprep.subr.mxu0 0.0
    %88 = vmatpush1.msra.mxu0 0.0
    %89 = vmatprep.subr.mxu0 0.0
    %90 = vmatpush1.msra.mxu0 0.0
    %91 = vmatprep.subr.mxu0 0.0
    %92 = vmatpush1.msra.mxu0 0.0
    %93 = vmatprep.subr.mxu0 0.0
    %94 = vmatpush1.msra.mxu0 0.0
    %95 = vmatprep.subr.mxu0 0.0
    %96 = vmatpush1.msra.mxu0 0.0
    %97 = vmatprep.subr.mxu0 0.0
    %98 = vmatpush1.msra.mxu0 0.0
    %99 = vmatprep.subr.mxu0 0.0
    %100 = vmatpush1.msra.mxu0 0.0
    %101 = vmatprep.subr.mxu0 0.0
    %102 = vmatpush1.msra.mxu0 0.0
    %103 = vmatprep.subr.mxu0 0.0
    %104 = vmatpush1.msra.mxu0 0.0
    %105 = vmatprep.subr.mxu0 0.0
    %106 = vmatpush1.msra.mxu0 0.0
    %107 = vmatprep.subr.mxu0 0.0
    %108 = vmatpush1.msra.mxu0 0.0
    %109 = vmatprep.subr.mxu0 0.0
    %110 = vmatpush1.msra.mxu0 0.0
    %111 = vmatprep.subr.mxu0 0.0
    %112 = vmatpush1.msra.mxu0 0.0
    %113 = vmatprep.subr.mxu0 0.0
    %114 = vmatpush1.msra.mxu0 0.0
    %115 = vmatprep.subr.mxu0 0.0
    %116 = vmatpush1.msra.mxu0 0.0
    %117 = vmatprep.mubr.f32.mxu0 0.0
    %118 = vmatmul.mubr.f32.gmra.mrb[0].mxu0 %v48
    %v119 = vpop.f32.mrb[0].mxu0
    %v120 = vadd.f32 %v39, %v119
    %v121 = vpop.f32.mrb[0].mxu0
    %122 = vmatprep.mubr.f32.mxu0 0.0
    %123 = vmatmul.mubr.f32.gmra.mrb[0].mxu0 %v51
    %v124 = vpop.f32.mrb[0].mxu0
    %v125 = vadd.f32 %v44, %v124
    %v126 = vpop.f32.mrb[0].mxu0
    %127 = vdwg.mxu0
    %vm128 = vcmask 261120
    %129 = vst.msk [vmem:[#allocation5] sm:$0xff] %vm128, %v120
    %130 = vst.msk [vmem:[#allocation5 + $0x8] sm:$0xff] %vm128, %v125
    // Predicated region
    $region18: #{tpu_custom_call.1} parent=1 // pred_check
      _
    $region19: #{tpu_custom_call.1} parent=1 // pred_check_branch
      %132 = sbr.rel (0) target = $region21
    $region20: #{tpu_custom_call.1} parent=1 // pred_region
      %s134 = ssub.s32 256, 256
      %135 = vsyncadd [#allocation4], %s134
      %s136 = sshll.u32 [#allocation5], 4
      %s137 = int_to_ptr.vmem [resolvable:$true] %s136
      %142 = dma.vmem_to_hbm [thread:$0]  %s137, 256, %s3, [#allocation4], 128, 128, 8
    $region21: #{tpu_custom_call.1} parent=1 // pred_fallthru
      _
    // Predicated region
    $region22: #{tpu_custom_call.1} parent=1 // pred_check
      _
    $region23: #{tpu_custom_call.1} parent=1 // pred_check_branch
      %144 = sbr.rel (0) target = $region25
    $region24: #{tpu_custom_call.1} parent=1 // pred_region
      %145 = dma.done [#allocation4], 256
    $region25: #{tpu_custom_call.1} parent=1 // pred_fallthru
      _
    %146 = vsyncpa [#allocation3], 1
    %147 = vsyncpa [#allocation4], 1

</llo_original>
